<compile_context>
chip_gen: v5e
topology: v5e:2x2
jax: 0.10.0
libtpu: 0.0.40
codegen_flags: <defaults>
</compile_context>

<pallas_src>
import functools

import jax
import jax.numpy as jnp
from jax.experimental import pallas as pl
from jax.experimental.pallas import tpu as pltpu

_LANE = 128
_LANE_CANDIDATES = (1024, 512, 256, 128)
_MAX_CHUNKS = 8                      # max outstanding HBM->HBM DMAs
_MIN_CHUNK_BYTES = 1 * 1024 * 1024   # don't split copies below ~1 MiB/chunk


def _sublane_pack(itemsize):
    # Packed vreg sublane height: 8 rows for 32-bit, 16 for 16-bit, 32 for 8-bit.
    return 8 * max(1, 4 // max(1, itemsize))


def _hbm_copy_kernel(x_ref, o_ref, sems, *, chunks):
    # `chunks` is a static tuple of (row_start, row_count).  Start every DMA
    # first (up to len(chunks) outstanding HBM->HBM copies), then wait on all.
    for c, (r0, nr) in enumerate(chunks):
        pltpu.make_async_copy(
            x_ref.at[pl.ds(r0, nr), :],
            o_ref.at[pl.ds(r0, nr), :],
            sems.at[c],
        ).start()
    for c, (r0, nr) in enumerate(chunks):
        pltpu.make_async_copy(
            x_ref.at[pl.ds(r0, nr), :],
            o_ref.at[pl.ds(r0, nr), :],
            sems.at[c],
        ).wait()


def _plan_chunks(rows, cols, itemsize):
    """Split `rows` into <= _MAX_CHUNKS contiguous, sublane-aligned row ranges,
    each ~>= _MIN_CHUNK_BYTES (except possibly the last)."""
    total_bytes = rows * cols * itemsize
    n = int(max(1, min(_MAX_CHUNKS, total_bytes // _MIN_CHUNK_BYTES)))
    if n == 1 or rows <= 1:
        return ((0, rows),)
    sub = _sublane_pack(itemsize)
    chunk_rows = -(-rows // n)                    # ceil(rows / n)
    chunk_rows = -(-chunk_rows // sub) * sub      # round up to sublane pack
    chunks = []
    r = 0
    while r < rows:
        nr = min(chunk_rows, rows - r)
        chunks.append((r, nr))
        r += nr
    return tuple(chunks)


def _hbm_copy_2d(x2d):
    """Identity copy of a (rows, cols) array via chunked HBM->HBM DMAs."""
    rows, cols = x2d.shape
    itemsize = jnp.dtype(x2d.dtype).itemsize
    chunks = _plan_chunks(rows, cols, itemsize)
    kernel = functools.partial(_hbm_copy_kernel, chunks=chunks)
    return pl.pallas_call(
        kernel,
        out_shape=jax.ShapeDtypeStruct((rows, cols), x2d.dtype),
        in_specs=[pl.BlockSpec(memory_space=pl.ANY)],
        out_specs=pl.BlockSpec(memory_space=pl.ANY),
        scratch_shapes=[pltpu.SemaphoreType.DMA((len(chunks),))],
        cost_estimate=pl.CostEstimate(
            flops=0,
            transcendentals=0,
            bytes_accessed=2 * rows * cols * itemsize,
        ),
    )(x2d)


def _resolve_target_shape(total, target_shape):
    tgt = list(target_shape)
    neg = [i for i, d in enumerate(tgt) if d == -1]
    if len(neg) > 1:
        raise ValueError("at most one -1 is allowed in target_shape")
    if neg:
        known = 1
        for d in tgt:
            if d != -1:
                known *= d
        if known == 0 or total % known != 0:
            raise ValueError(
                f"cannot infer -1 dimension: {total} elements not divisible by {known}")
        tgt[neg[0]] = total // known
    prod = 1
    for d in tgt:
        prod *= d
    if prod != total:
        raise ValueError(f"target shape {tuple(tgt)} incompatible with {total} elements")
    return tuple(tgt)


def pallas_reshape(x, target_shape):
    """torch.Tensor.view(target_shape) for a contiguous (row-major) tensor."""
    total = int(x.size)
    tgt = _resolve_target_shape(total, target_shape)
    if total == 0 or total % _LANE != 0:
        # A contiguous view is metadata-only; for ragged element counts a
        # Pallas copy would only add HBM traffic, so reshape directly.
        return jnp.reshape(x, tgt)
    cols = next(c for c in _LANE_CANDIDATES if total % c == 0)
    rows = total // cols
    out2d = _hbm_copy_2d(jnp.reshape(x, (rows, cols)))
    return jnp.reshape(out2d, tgt)


if __name__ == "__main__":
    key = jax.random.PRNGKey(0)

    # Small NCHW input, as used inside ShuffleNet's channel shuffle:
    # (B, C, H, W) = (2, 4, 16, 16) -> view to (B, groups, C//groups, H, W).
    B, C, H, W = 2, 4, 16, 16
    groups = 2
    x = jax.random.normal(key, (B, C, H, W), dtype=jnp.float32)

    target_shape = (B, groups, C // groups, H, W)
    y = jax.block_until_ready(pallas_reshape(x, target_shape))
    ref = jnp.reshape(x, target_shape)
    assert y.shape == tuple(target_shape)
    assert y.dtype == x.dtype
    assert bool(jnp.array_equal(y, ref))

    # -1 inference path (torch.view semantics).
    y2 = jax.block_until_ready(pallas_reshape(x, (B, -1)))
    assert y2.shape == (B, C * H * W)
    assert bool(jnp.array_equal(y2, x.reshape(B, -1)))

    # Larger input exercising the multi-chunk (4 outstanding HBM->HBM DMAs) path.
    xb = jax.random.normal(jax.random.PRNGKey(0), (8, 8, 128, 128), dtype=jnp.float32)
    yb = jax.block_until_ready(pallas_reshape(xb, (8, 2, 4, 128, 128)))
    assert bool(jnp.array_equal(yb, jnp.reshape(xb, (8, 2, 4, 128, 128))))

    # Ragged element count: pure metadata reshape (no copy at all).
    xr = jax.random.normal(jax.random.PRNGKey(0), (3, 5, 7), dtype=jnp.float32)
    yr = jax.block_until_ready(pallas_reshape(xr, (5, 21)))
    assert bool(jnp.array_equal(yr, jnp.reshape(xr, (5, 21))))

    print("KERNEL_OK")
</pallas_src>

<mosaic_0001>
module attributes {stable_mosaic.version = 11 : i64} {
  func.func @_hbm_copy_kernel(%arg0: memref<2x1024xf32, #tpu.memory_space<any>>, %arg1: memref<2x1024xf32, #tpu.memory_space<any>>, %arg2: memref<1x!tpu.dma_semaphore, #tpu.memory_space<semaphore_mem>>) attributes {dimension_semantics = [], scalar_prefetch = 0 : i64, scratch_operands = 1 : i64, tpu.core_type = #tpu.core_type<tc>} {
    %c0_i32 = arith.constant 0 : i32
    %c0_i32_0 = arith.constant 0 : i32
    %c0_i32_1 = arith.constant 0 : i32
    %0 = tpu.memref_slice %arg0[%c0_i32_0, %c0_i32_1] : memref<2x1024xf32, #tpu.memory_space<any>> -> memref<2x1024xf32, #tpu.memory_space<any>>
    %c0_i32_2 = arith.constant 0 : i32
    %c0_i32_3 = arith.constant 0 : i32
    %1 = tpu.memref_slice %arg1[%c0_i32_2, %c0_i32_3] : memref<2x1024xf32, #tpu.memory_space<any>> -> memref<2x1024xf32, #tpu.memory_space<any>>
    %2 = tpu.memref_slice %arg2[%c0_i32] : memref<1x!tpu.dma_semaphore, #tpu.memory_space<semaphore_mem>> -> memref<1x!tpu.dma_semaphore, #tpu.memory_space<semaphore_mem>>
    %3 = tpu.memref_squeeze %2 : memref<1x!tpu.dma_semaphore, #tpu.memory_space<semaphore_mem>> -> memref<!tpu.dma_semaphore, #tpu.memory_space<semaphore_mem>>
    tpu.enqueue_dma source(%0 : memref<2x1024xf32, #tpu.memory_space<any>>) target(%1 : memref<2x1024xf32, #tpu.memory_space<any>>) target_semaphore(%3 : memref<!tpu.dma_semaphore, #tpu.memory_space<semaphore_mem>>)
    %c0_i32_4 = arith.constant 0 : i32
    %c0_i32_5 = arith.constant 0 : i32
    %c0_i32_6 = arith.constant 0 : i32
    %4 = tpu.memref_slice %arg0[%c0_i32_5, %c0_i32_6] : memref<2x1024xf32, #tpu.memory_space<any>> -> memref<2x1024xf32, #tpu.memory_space<any>>
    %c0_i32_7 = arith.constant 0 : i32
    %c0_i32_8 = arith.constant 0 : i32
    %5 = tpu.memref_slice %arg1[%c0_i32_7, %c0_i32_8] : memref<2x1024xf32, #tpu.memory_space<any>> -> memref<2x1024xf32, #tpu.memory_space<any>>
    %6 = tpu.memref_slice %arg2[%c0_i32_4] : memref<1x!tpu.dma_semaphore, #tpu.memory_space<semaphore_mem>> -> memref<1x!tpu.dma_semaphore, #tpu.memory_space<semaphore_mem>>
    %7 = tpu.memref_squeeze %6 : memref<1x!tpu.dma_semaphore, #tpu.memory_space<semaphore_mem>> -> memref<!tpu.dma_semaphore, #tpu.memory_space<semaphore_mem>>
    tpu.wait_dma2 semaphore(%7 : memref<!tpu.dma_semaphore, #tpu.memory_space<semaphore_mem>>) src(%4 : memref<2x1024xf32, #tpu.memory_space<any>>) dst(%5 : memref<2x1024xf32, #tpu.memory_space<any>>)
    return
  }
}

</mosaic_0001>

<llo_original>
// kernel: tpu_custom_call.1
$region0: #{tpu_custom_call.1}
  #allocation0 [shape = 'u32[]', space=smem, size = 0x4, offset = 0x4, fixed_abs, tag = 'smem constant byte address 0x4 - core index']
  #allocation1 [shape = 'u32[72,128]{1,0:T(1,128)}', space=vmem, size = 0x9000, scoped, tag = 'internal scratch']
  #allocation2 [shape = 's32[1]{0}', space=sflag, size = 0x4, scoped, tag = 'scratch operand']
  #allocation3 [shape = 's32[]', space=sflag, size = 0x4, offset = 0, fixed_abs, tag = 'sflag constant byte address 0x0 - dummy sync flag']
  #allocation4 [shape = 'u32[0]{0}', space=smem, size = 0, offset = 0, fixed_abs, tag = 'smem constant byte address 0x0 - null']
  %s0 = inlined_call_operand.hbm [shape: f32[2,1024], index: 0, kind: input, shape index: {}]
  %s1 = inlined_call_operand.hbm [shape: f32[2,1024], index: 1, kind: output, shape index: {}]
  %s2 = sld [smem:[#allocation0]]
  $region2: #{tpu_custom_call.1} parent=0
    _
  %s4 = ssub.s32 1, %s2
  %s5 = scalar_select 0, %s4, %s2
  %s7 = sshll.u32 1, 14
  %s8 = sxor.u32 4294967295, %s7
  %s10 = sshll.u32 %s0, 4
  %s11 = int_to_ptr.hbm [resolvable:$true] %s10
  %s12 = sshll.u32 %s1, 4
  %s13 = int_to_ptr.hbm [resolvable:$true] %s12
  %16 = dma.general %s11, 256, %s13, [#allocation2], [#allocation3], [#allocation4], 0, 0
  %s17 = smul.u32 2, 1
  %s18 = smul.u32 %s17, 8
  %s19 = sshll.u32 %s18, 4
  %20 = dma.done [#allocation2], %s19
  %21 = vsyncmov [#allocation2]
  %s22 = vpop.sfrf %21
  %p23 = scmp.eq.s32.totalorder %s22, 0
  %p24 = pneg %p23
  %26 = shalt.err (%p24)

</llo_original>
